<compile_context>
chip_gen: v5e
topology: v5e:2x2
jax: 0.10.0
libtpu: 0.0.40
codegen_flags: <defaults>
</compile_context>

<pallas_src>
import functools

import jax
import jax.numpy as jnp
from jax.experimental import pallas as pl
from jax.experimental.pallas import tpu as pltpu

LN_EPS = 1e-5


def _round_up(x, m):
    return ((x + m - 1) // m) * m


# ----------------------------- kernels -----------------------------


def _kernel_fullwidth(x_ref, w_ref, b_ref, o_ref):
    # x_ref: (TM, H) rows; w_ref: (H, H) folded weight; b_ref: (1, H); o_ref: (TM, H).
    xf = x_ref[...].astype(jnp.float32)

    # LayerNorm statistics over H (f32).
    mean = jnp.mean(xf, axis=-1, keepdims=True)
    centered = xf - mean
    var = jnp.mean(centered * centered, axis=-1, keepdims=True)
    inv = jax.lax.rsqrt(var + LN_EPS)

    # Folded sublayer: z = xn @ (gamma*W^T) + (beta@W^T + b); MXU runs in weight dtype,
    # f32 accumulation. The LN output is cast directly into the matmul LHS (no f32 xn kept).
    xn = (centered * inv).astype(w_ref.dtype)
    z = jnp.dot(xn, w_ref[...], preferred_element_type=jnp.float32)
    z = z + b_ref[...].astype(jnp.float32)

    # Dropout: identity in eval mode.
    # TODO(synk): train-mode dropout would use pltpu.prng_seed + pltpu.stateful_bernoulli.

    # Residual connection.
    o_ref[...] = (xf + z).astype(o_ref.dtype)


def _kernel_coltiled(x_ref, xres_ref, w_ref, b_ref, o_ref, xn_ref):
    # x_ref:    (TM, H)  full-width rows (needed for LN stats), resident across j
    # xres_ref: (TM, TN) residual tile of the same x (pipelined per (i, j))
    # w_ref:    (H, TN)  folded weight column tile
    # b_ref:    (1, TN)  folded bias tile
    # xn_ref:   (TM, H)  VMEM scratch caching the LayerNorm output across j
    j = pl.program_id(1)

    @pl.when(j == 0)
    def _():
        xf = x_ref[...].astype(jnp.float32)
        mean = jnp.mean(xf, axis=-1, keepdims=True)
        centered = xf - mean
        var = jnp.mean(centered * centered, axis=-1, keepdims=True)
        xn_ref[...] = (centered * jax.lax.rsqrt(var + LN_EPS)).astype(xn_ref.dtype)

    z = jnp.dot(xn_ref[...], w_ref[...], preferred_element_type=jnp.float32)
    z = z + b_ref[...].astype(jnp.float32)
    o_ref[...] = (xres_ref[...].astype(jnp.float32) + z).astype(o_ref.dtype)


# ----------------------------- wrapper -----------------------------


@functools.partial(jax.jit, static_argnames=("row_tile", "col_tile", "weight_dtype",
                                             "single_buffer_weight"))
def _sublayer_connection_impl(x, w_t, b, gamma, beta, *, row_tile, col_tile,
                              weight_dtype, single_buffer_weight):
    B, S, H = x.shape
    M = B * S

    # ---- Fold LayerNorm affine into the linear params (exact) ----
    #   (xn*gamma + beta) @ W^T + b == xn @ (gamma[:,None]*W^T) + (beta @ W^T + b)
    w_f32 = w_t.astype(jnp.float32)
    w_folded = gamma.astype(jnp.float32)[:, None] * w_f32
    b_folded = (beta.astype(jnp.float32) @ w_f32 + b.astype(jnp.float32)).reshape(1, H)
    w_dtype = jnp.dtype(weight_dtype) if weight_dtype is not None else jnp.dtype(w_t.dtype)
    w_folded = w_folded.astype(w_dtype)

    x2d = x.reshape(M, H)
    x_bytes = jnp.dtype(x.dtype).itemsize
    w_bytes = w_dtype.itemsize

    # ---- Column tiling (only needed for very large H) ----
    tn = int(col_tile) if col_tile is not None else H
    if H % tn != 0:
        raise ValueError("col_tile must divide H")
    if tn != H and tn % 128 != 0:
        raise ValueError("col_tile must be a multiple of 128 (prefer 256 on v6e/v7x) or equal H")
    num_n = H // tn
    col_tiled = num_n > 1

    # ---- Row tiling ----
    if row_tile is None:
        row_tile = 512 if col_tiled else 256   # larger rows amortize weight re-streaming
    rt = max(8, min(int(row_tile), _round_up(M, 8)))

    # ---- VMEM budget with a per-generation ceiling (~78% of physical per-core VMEM) ----
    try:
        vmem_capacity = int(getattr(pltpu.get_tpu_info(), "vmem_capacity_bytes", 64 << 20))
    except Exception:
        vmem_capacity = 64 << 20               # conservative (v7x-sized) if the query fails
    vmem_cap = int(0.78 * vmem_capacity)       # ~50 MiB on v7x, ~100 MiB on v5e/v6e

    # Weight/bias are single-buffered only when grid-invariant (num_n == 1); when column
    # tiled they change every inner step, so keep double buffering to hide their DMA.
    sb = bool(single_buffer_weight) and not col_tiled

    def vmem_need(rt_):
        w_bufs = 1 if sb else 2
        return (w_bufs * (H * tn + tn) * w_bytes                      # weight + bias tiles
                + 2 * rt_ * H * x_bytes                               # x row tile (dbl-buf)
                + (2 * rt_ * tn * x_bytes if col_tiled else 0)        # residual tile
                + 2 * rt_ * tn * x_bytes                              # output tile (dbl-buf)
                + (rt_ * H * w_bytes if col_tiled else 0)             # xn LN-cache scratch
                + 3 * rt_ * H * 4                                     # f32 LN intermediates
                + rt_ * tn * 4                                        # f32 matmul accumulator
                + (2 << 20))                                          # Mosaic scratch headroom

    # Shrink the row tile (never clamp the limit) until it fits under the ceiling.
    while rt > 128 and vmem_need(rt) > vmem_cap:
        rt = max(128, rt // 2)
    if vmem_need(rt) > vmem_cap:
        raise ValueError(
            f"VMEM budget exceeded (need ~{vmem_need(rt) >> 20} MiB, cap {vmem_cap >> 20} MiB):"
            " pass col_tile (multiple of 256) and/or weight_dtype=jnp.bfloat16.")
    vmem_limit = int(min(max(vmem_need(rt), 32 << 20), vmem_cap))

    num_m = pl.cdiv(M, rt)
    grid = (num_m, num_n)
    # NOTE: when M % rt != 0, padded rows of the last block run LN/matmul on uninitialized
    # VMEM; rows are independent and the out-of-bounds store is masked, so valid output is
    # unaffected (garbage stays confined to the padded lanes).

    # ---- BlockSpecs ----
    if sb:
        w_spec = pl.BlockSpec((H, tn), lambda i, j: (0, j), pipeline_mode=pl.Buffered(1))
        b_spec = pl.BlockSpec((1, tn), lambda i, j: (0, j), pipeline_mode=pl.Buffered(1))
    else:
        w_spec = pl.BlockSpec((H, tn), lambda i, j: (0, j))
        b_spec = pl.BlockSpec((1, tn), lambda i, j: (0, j))
    x_spec = pl.BlockSpec((rt, H), lambda i, j: (i, 0))   # resident across j (LN source)

    cost = pl.CostEstimate(
        flops=2 * M * H * H + 10 * M * H,
        transcendentals=M,                                 # one rsqrt per row
        bytes_accessed=int((2 + (1 if col_tiled else 0)) * M * H * x_bytes
                           + (num_m if col_tiled else 1) * H * H * w_bytes + H * 4),
    )
    cp = pltpu.CompilerParams(
        dimension_semantics=("parallel", "arbitrary"),     # rows megacore-sharded on v7x
        vmem_limit_bytes=vmem_limit)

    if col_tiled:
        out = pl.pallas_call(
            _kernel_coltiled,
            out_shape=jax.ShapeDtypeStruct((M, H), x.dtype),
            grid_spec=pltpu.PrefetchScalarGridSpec(
                num_scalar_prefetch=0,
                grid=grid,
                in_specs=[x_spec,                                        # full rows for LN
                          pl.BlockSpec((rt, tn), lambda i, j: (i, j)),   # residual tile
                          w_spec, b_spec],
                out_specs=pl.BlockSpec((rt, tn), lambda i, j: (i, j)),
                scratch_shapes=[pltpu.VMEM((rt, H), w_dtype)]),          # LN cache across j
            compiler_params=cp,
            cost_estimate=cost,
        )(x2d, x2d, w_folded, b_folded)
    else:
        out = pl.pallas_call(
            _kernel_fullwidth,
            out_shape=jax.ShapeDtypeStruct((M, H), x.dtype),
            grid_spec=pltpu.PrefetchScalarGridSpec(
                num_scalar_prefetch=0,
                grid=grid,
                in_specs=[x_spec, w_spec, b_spec],
                out_specs=pl.BlockSpec((rt, H), lambda i, j: (i, 0)),
                scratch_shapes=[]),
            compiler_params=cp,
            cost_estimate=cost,
        )(x2d, w_folded, b_folded)
    return out.reshape(B, S, H)


_BUFFERED_OK = None   # lazily determined: does this JAX accept pipeline_mode=pl.Buffered(1)?


def sublayer_connection(x, w_t, b, gamma, beta, *, row_tile=None, col_tile=None,
                        weight_dtype=None):
    """x: (B,S,H). w_t: (H,H) = W.T of the PyTorch Linear. Returns (B,S,H).

    row_tile: rows (B*S) per grid step (auto: 256, or 512 when col-tiled; auto-shrunk to VMEM).
    col_tile: optional N-tiling of the weight for very large H (multiple of 128, prefer 256).
    weight_dtype: e.g. jnp.bfloat16 to run the matmul at the MXU bf16 rate (f32 accumulation).
    """
    global _BUFFERED_OK
    kwargs = dict(row_tile=row_tile, col_tile=col_tile, weight_dtype=weight_dtype)
    if _BUFFERED_OK is None:
        try:
            out = _sublayer_connection_impl(x, w_t, b, gamma, beta,
                                            single_buffer_weight=True, **kwargs)
            _BUFFERED_OK = True
            return out
        except Exception:
            _BUFFERED_OK = False   # fall back to default double-buffered weight
    return _sublayer_connection_impl(x, w_t, b, gamma, beta,
                                     single_buffer_weight=_BUFFERED_OK, **kwargs)


# ----------------------------- reference & test -----------------------------


def _reference(x, w_t, b, gamma, beta):
    xf = x.astype(jnp.float32)
    mean = jnp.mean(xf, axis=-1, keepdims=True)
    var = jnp.mean((xf - mean) ** 2, axis=-1, keepdims=True)
    xn = (xf - mean) * jax.lax.rsqrt(var + LN_EPS)
    y = xn * gamma.astype(jnp.float32) + beta.astype(jnp.float32)
    z = y @ w_t.astype(jnp.float32) + b.astype(jnp.float32)
    return (xf + z).astype(x.dtype)


if __name__ == "__main__":
    key = jax.random.PRNGKey(0)
    # SublayerConnection(size=32) on x of shape (batch=2, seq=8, hidden=32).
    B, S, H = 2, 8, 32
    k_x, k_w, k_b, k_g, k_be = jax.random.split(key, 5)
    x = jax.random.normal(k_x, (B, S, H), dtype=jnp.float32)

    # Deterministic "sublayer" Linear(H, H) (PyTorch weight is (out,in); pass its transpose).
    w = jax.random.normal(k_w, (H, H), dtype=jnp.float32) * (1.0 / jnp.sqrt(H))
    w_t = w.T
    b = jax.random.normal(k_b, (H,), dtype=jnp.float32) * 0.01
    gamma = jnp.ones((H,), jnp.float32) + 0.01 * jax.random.normal(k_g, (H,), jnp.float32)
    beta = 0.01 * jax.random.normal(k_be, (H,), jnp.float32)

    ref = _reference(x, w_t, b, gamma, beta)

    # 1) f32 weights: exact vs reference.
    out = jax.block_until_ready(
        sublayer_connection(x, w_t, b, gamma, beta, weight_dtype=jnp.float32))
    assert out.shape == (B, S, H)
    assert jnp.allclose(out, ref, atol=1e-4, rtol=1e-4), "f32 mismatch vs reference"

    # 2) bf16 weights (full-rate MXU, f32 accumulation): looser tolerance.
    out_bf = jax.block_until_ready(
        sublayer_connection(x, w_t, b, gamma, beta, weight_dtype=jnp.bfloat16))
    assert jnp.allclose(out_bf, ref, atol=5e-2, rtol=5e-2), "bf16-weight mismatch"

    # 3) bf16 activations + bf16 weights (HBM-bound regime win on v5e/v6e).
    x_bf = x.astype(jnp.bfloat16)
    ref_bf = _reference(x_bf.astype(jnp.float32), w_t, b, gamma, beta)
    out_act = jax.block_until_ready(
        sublayer_connection(x_bf, w_t, b, gamma, beta, weight_dtype=jnp.bfloat16))
    assert out_act.dtype == jnp.bfloat16
    assert jnp.allclose(out_act.astype(jnp.float32), ref_bf, atol=1e-1, rtol=1e-1), \
        "bf16-activation mismatch"

    # 4) Column-tiled path (exercises the LN-cache-across-j kernel) at a slightly larger H.
    H2, B2, S2 = 256, 2, 64
    k2 = jax.random.split(key, 6)
    x2 = jax.random.normal(k2[0], (B2, S2, H2), dtype=jnp.float32)
    w2 = jax.random.normal(k2[1], (H2, H2), dtype=jnp.float32) * (1.0 / jnp.sqrt(H2))
    b2 = jax.random.normal(k2[2], (H2,), dtype=jnp.float32) * 0.01
    g2 = jnp.ones((H2,), jnp.float32) + 0.01 * jax.random.normal(k2[3], (H2,), jnp.float32)
    be2 = 0.01 * jax.random.normal(k2[4], (H2,), jnp.float32)
    ref2 = _reference(x2, w2.T, b2, g2, be2)
    out2 = jax.block_until_ready(
        sublayer_connection(x2, w2.T, b2, g2, be2, col_tile=128, weight_dtype=jnp.float32))
    assert jnp.allclose(out2, ref2, atol=2e-3, rtol=2e-3), "col-tiled mismatch"

    print("KERNEL_OK")
</pallas_src>

<mosaic_0001>
module attributes {stable_mosaic.version = 11 : i64} {
  func.func @_kernel_fullwidth(%arg0: i32, %arg1: i32, %arg2: memref<16x32xf32, #tpu.memory_space<vmem>>, %arg3: memref<32x32xf32, #tpu.memory_space<vmem>>, %arg4: memref<1x32xf32, #tpu.memory_space<vmem>>, %arg5: memref<16x32xf32, #tpu.memory_space<vmem>>) attributes {dimension_semantics = [#tpu.dimension_semantics<parallel>, #tpu.dimension_semantics<arbitrary>], iteration_bounds = array<i64: 1, 1>, scalar_prefetch = 0 : i64, scratch_operands = 0 : i64, tpu.core_type = #tpu.core_type<tc>, window_params = [{transform_indices = @transform_0, window_bounds = array<i64: 16, 32>}, {pipeline_mode = #tpu.pipeline_mode<synchronous>, transform_indices = @transform_1, window_bounds = array<i64: 32, 32>}, {pipeline_mode = #tpu.pipeline_mode<synchronous>, transform_indices = @transform_2, window_bounds = array<i64: 1, 32>}, {transform_indices = @transform_3, window_bounds = array<i64: 16, 32>}]} {
    %c0 = arith.constant 0 : index
    %c0_0 = arith.constant 0 : index
    %0 = vector.load %arg2[%c0, %c0_0] : memref<16x32xf32, #tpu.memory_space<vmem>>, vector<16x32xf32>
    %cst = arith.constant dense<0.000000e+00> : vector<16xf32>
    %1 = vector.multi_reduction <add>, %0, %cst [1] : vector<16x32xf32> to vector<16xf32>
    %2 = vector.shape_cast %1 : vector<16xf32> to vector<16x1xf32>
    %cst_1 = arith.constant 3.200000e+01 : f32
    %3 = vector.broadcast %cst_1 : f32 to vector<16x1xf32>
    %4 = arith.divf %2, %3 : vector<16x1xf32>
    %5 = vector.broadcast %4 : vector<16x1xf32> to vector<16x32xf32>
    %6 = arith.subf %0, %5 : vector<16x32xf32>
    %7 = arith.mulf %6, %6 : vector<16x32xf32>
    %cst_2 = arith.constant dense<0.000000e+00> : vector<16xf32>
    %8 = vector.multi_reduction <add>, %7, %cst_2 [1] : vector<16x32xf32> to vector<16xf32>
    %9 = vector.shape_cast %8 : vector<16xf32> to vector<16x1xf32>
    %cst_3 = arith.constant 3.200000e+01 : f32
    %10 = vector.broadcast %cst_3 : f32 to vector<16x1xf32>
    %11 = arith.divf %9, %10 : vector<16x1xf32>
    %cst_4 = arith.constant 9.99999974E-6 : f32
    %12 = vector.broadcast %cst_4 : f32 to vector<16x1xf32>
    %13 = arith.addf %11, %12 : vector<16x1xf32>
    %14 = math.rsqrt %13 : vector<16x1xf32>
    %15 = vector.broadcast %14 : vector<16x1xf32> to vector<16x32xf32>
    %16 = arith.mulf %6, %15 : vector<16x32xf32>
    %c0_5 = arith.constant 0 : index
    %c0_6 = arith.constant 0 : index
    %17 = vector.load %arg3[%c0_5, %c0_6] : memref<32x32xf32, #tpu.memory_space<vmem>>, vector<32x32xf32>
    %cst_7 = arith.constant dense<0.000000e+00> : vector<16x32xf32>
    %18 = tpu.matmul %16, %17, %cst_7 {dimension_numbers = #tpu.dot_dimension_numbers<[1], [0], [0], [1], [0, 0, 1, 1], [], []>} : vector<16x32xf32>, vector<32x32xf32>, vector<16x32xf32> -> vector<16x32xf32>
    %c0_8 = arith.constant 0 : index
    %c0_9 = arith.constant 0 : index
    %19 = vector.load %arg4[%c0_8, %c0_9] : memref<1x32xf32, #tpu.memory_space<vmem>>, vector<1x32xf32>
    %20 = vector.broadcast %19 : vector<1x32xf32> to vector<16x32xf32>
    %21 = arith.addf %18, %20 : vector<16x32xf32>
    %22 = arith.addf %0, %21 : vector<16x32xf32>
    %c0_10 = arith.constant 0 : index
    %c0_11 = arith.constant 0 : index
    %23 = vector.load %arg5[%c0_10, %c0_11] : memref<16x32xf32, #tpu.memory_space<vmem>>, vector<16x32xf32>
    tpu.vector_store %arg5[%c0_10, %c0_11], %22 {strides = array<i32>} : memref<16x32xf32, #tpu.memory_space<vmem>>, vector<16x32xf32>,
    return
  }
  func.func @transform_0(%arg0: i32, %arg1: i32) -> (i32, i32) {
    %c0_i32 = arith.constant 0 : i32
    %c0_i32_0 = arith.constant 0 : i32
    return %arg0, %c0_i32 : i32, i32
  }
  func.func @transform_1(%arg0: i32, %arg1: i32) -> (i32, i32) {
    %c0_i32 = arith.constant 0 : i32
    %c0_i32_0 = arith.constant 0 : i32
    return %c0_i32, %arg1 : i32, i32
  }
  func.func @transform_2(%arg0: i32, %arg1: i32) -> (i32, i32) {
    %c0_i32 = arith.constant 0 : i32
    %c0_i32_0 = arith.constant 0 : i32
    return %c0_i32, %arg1 : i32, i32
  }
  func.func @transform_3(%arg0: i32, %arg1: i32) -> (i32, i32) {
    %c0_i32 = arith.constant 0 : i32
    %c0_i32_0 = arith.constant 0 : i32
    return %arg0, %c0_i32 : i32, i32
  }
}

module attributes {stable_mosaic.version = 11 : i64} {
  func.func @_kernel_fullwidth(%arg0: i32, %arg1: i32, %arg2: memref<16x32xf32, #tpu.memory_space<vmem>>, %arg3: memref<32x32xf32, #tpu.memory_space<vmem>>, %arg4: memref<1x32xf32, #tpu.memory_space<vmem>>, %arg5: memref<16x32xf32, #tpu.memory_space<vmem>>) attributes {dimension_semantics = [#tpu.dimension_semantics<parallel>, #tpu.dimension_semantics<arbitrary>], iteration_bounds = array<i64: 1, 1>, scalar_prefetch = 0 : i64, scratch_operands = 0 : i64, tpu.core_type = #tpu.core_type<tc>, window_params = [{transform_indices = @transform_0, window_bounds = array<i64: 16, 32>}, {transform_indices = @transform_1, window_bounds = array<i64: 32, 32>}, {transform_indices = @transform_2, window_bounds = array<i64: 1, 32>}, {transform_indices = @transform_3, window_bounds = array<i64: 16, 32>}]} {
    %c0 = arith.constant 0 : index
    %c0_0 = arith.constant 0 : index
    %0 = vector.load %arg2[%c0, %c0_0] : memref<16x32xf32, #tpu.memory_space<vmem>>, vector<16x32xf32>
    %cst = arith.constant dense<0.000000e+00> : vector<16xf32>
    %1 = vector.multi_reduction <add>, %0, %cst [1] : vector<16x32xf32> to vector<16xf32>
    %2 = vector.shape_cast %1 : vector<16xf32> to vector<16x1xf32>
    %cst_1 = arith.constant 3.200000e+01 : f32
    %3 = vector.broadcast %cst_1 : f32 to vector<16x1xf32>
    %4 = arith.divf %2, %3 : vector<16x1xf32>
    %5 = vector.broadcast %4 : vector<16x1xf32> to vector<16x32xf32>
    %6 = arith.subf %0, %5 : vector<16x32xf32>
    %7 = arith.mulf %6, %6 : vector<16x32xf32>
    %cst_2 = arith.constant dense<0.000000e+00> : vector<16xf32>
    %8 = vector.multi_reduction <add>, %7, %cst_2 [1] : vector<16x32xf32> to vector<16xf32>
    %9 = vector.shape_cast %8 : vector<16xf32> to vector<16x1xf32>
    %cst_3 = arith.constant 3.200000e+01 : f32
    %10 = vector.broadcast %cst_3 : f32 to vector<16x1xf32>
    %11 = arith.divf %9, %10 : vector<16x1xf32>
    %cst_4 = arith.constant 9.99999974E-6 : f32
    %12 = vector.broadcast %cst_4 : f32 to vector<16x1xf32>
    %13 = arith.addf %11, %12 : vector<16x1xf32>
    %14 = math.rsqrt %13 : vector<16x1xf32>
    %15 = vector.broadcast %14 : vector<16x1xf32> to vector<16x32xf32>
    %16 = arith.mulf %6, %15 : vector<16x32xf32>
    %c0_5 = arith.constant 0 : index
    %c0_6 = arith.constant 0 : index
    %17 = vector.load %arg3[%c0_5, %c0_6] : memref<32x32xf32, #tpu.memory_space<vmem>>, vector<32x32xf32>
    %cst_7 = arith.constant dense<0.000000e+00> : vector<16x32xf32>
    %18 = tpu.matmul %16, %17, %cst_7 {dimension_numbers = #tpu.dot_dimension_numbers<[1], [0], [0], [1], [0, 0, 1, 1], [], []>} : vector<16x32xf32>, vector<32x32xf32>, vector<16x32xf32> -> vector<16x32xf32>
    %c0_8 = arith.constant 0 : index
    %c0_9 = arith.constant 0 : index
    %19 = vector.load %arg4[%c0_8, %c0_9] : memref<1x32xf32, #tpu.memory_space<vmem>>, vector<1x32xf32>
    %20 = vector.broadcast %19 : vector<1x32xf32> to vector<16x32xf32>
    %21 = arith.addf %18, %20 : vector<16x32xf32>
    %22 = arith.addf %0, %21 : vector<16x32xf32>
    %c0_10 = arith.constant 0 : index
    %c0_11 = arith.constant 0 : index
    %23 = vector.load %arg5[%c0_10, %c0_11] : memref<16x32xf32, #tpu.memory_space<vmem>>, vector<16x32xf32>
    tpu.vector_store %arg5[%c0_10, %c0_11], %22 {strides = array<i32>} : memref<16x32xf32, #tpu.memory_space<vmem>>, vector<16x32xf32>,
    return
  }
  func.func @transform_0(%arg0: i32, %arg1: i32) -> (i32, i32) {
    %c0_i32 = arith.constant 0 : i32
    %c0_i32_0 = arith.constant 0 : i32
    return %arg0, %c0_i32 : i32, i32
  }
  func.func @transform_1(%arg0: i32, %arg1: i32) -> (i32, i32) {
    %c0_i32 = arith.constant 0 : i32
    %c0_i32_0 = arith.constant 0 : i32
    return %c0_i32, %arg1 : i32, i32
  }
  func.func @transform_2(%arg0: i32, %arg1: i32) -> (i32, i32) {
    %c0_i32 = arith.constant 0 : i32
    %c0_i32_0 = arith.constant 0 : i32
    return %c0_i32, %arg1 : i32, i32
  }
  func.func @transform_3(%arg0: i32, %arg1: i32) -> (i32, i32) {
    %c0_i32 = arith.constant 0 : i32
    %c0_i32_0 = arith.constant 0 : i32
    return %arg0, %c0_i32 : i32, i32
  }
}

</mosaic_0001>

<llo_original>
// kernel: _sublayer_connection_impl.1
$region0: #{_sublayer_connection_impl.1}
  #allocation0 [shape = 'u32[]', space=smem, size = 0x4, offset = 0x4, fixed_abs, tag = 'smem constant byte address 0x4 - core index']
  #allocation1 [shape = 'u32[72,128]{1,0:T(1,128)}', space=vmem, size = 0x9000, scoped, tag = 'internal scratch']
  %s0 = inlined_call_operand.vmem [shape: f32[16,32], index: 0, kind: input, shape index: {}]
  %s1 = inlined_call_operand.vmem [shape: f32[32,32], index: 1, kind: input, shape index: {}]
  %s2 = inlined_call_operand.vmem [shape: f32[1,32], index: 2, kind: input, shape index: {}]
  %s3 = inlined_call_operand.hbm [shape: f32[16,32], index: 3, kind: output, shape index: {}]
  %s4 = sld [smem:[#allocation0]]
  $region22: #{_sublayer_connection_impl.1} parent=0
    _
  %s6 = ssub.s32 1, %s4
  %s7 = scalar_select 0, %s6, %s4
  $region1: #{_sublayer_connection_impl.1} parent=0
    #allocation2 [shape = 'u8[8192]{0}', space=vmem, size = 0x2000, scoped, tag = 'output window, operand 0, single buffered']
    #allocation3 [shape = 's32[1]{0}', space=sflag, size = 0x4, scoped, tag = 'scoped memory for _sublayer_connection_impl.1']
    %8 = vsyncpa [#allocation3], 0
    // Predicated region
    $region2: #{_sublayer_connection_impl.1} parent=1 // pred_check
      _
    $region3: #{_sublayer_connection_impl.1} parent=1 // pred_check_branch
      %10 = sbr.rel (0) target = $region5
    $region4: #{_sublayer_connection_impl.1} parent=1 // pred_region
      _
    $region5: #{_sublayer_connection_impl.1} parent=1 // pred_fallthru
      _
    // Predicated region
    $region6: #{_sublayer_connection_impl.1} parent=1 // pred_check
      _
    $region7: #{_sublayer_connection_impl.1} parent=1 // pred_check_branch
      %12 = sbr.rel (0) target = $region9
    $region8: #{_sublayer_connection_impl.1} parent=1 // pred_region
      _
    $region9: #{_sublayer_connection_impl.1} parent=1 // pred_fallthru
      _
    // Predicated region
    $region10: #{_sublayer_connection_impl.1} parent=1 // pred_check
      _
    $region11: #{_sublayer_connection_impl.1} parent=1 // pred_check_branch
      %14 = sbr.rel (0) target = $region13
    $region12: #{_sublayer_connection_impl.1} parent=1 // pred_region
      _
    $region13: #{_sublayer_connection_impl.1} parent=1 // pred_fallthru
      _
    %v15 = vld [vmem:[%s0] sm:$0xff]
    %v16 = vld [vmem:[%s0 + $0x8] sm:$0xff]
    %vm17 = vcmask 261120
    %v18 = vsel %vm17, %v15, 0.0
    %19 = vadd.xlane.f32.xlu0 %v18
    %v20 = vpop.xlane.xlu0 %19
    %v21 = vsel %vm17, %v16, 0.0
    %22 = vadd.xlane.f32.xlu0 %v21
    %v23 = vpop.xlane.xlu0 %22
    %v24 = vrcp.pop 32.0
    %v25 = vmul.f32 32.0, %v24
    %v26 = vsub.f32 1.0, %v25
    %v27 = vmul.f32 %v24, %v26
    %v28 = vadd.f32 %v24, %v27
    %vm29 = vweird.f32 %v24
    %v30 = vsel %vm29, %v24, %v28
    %v31 = vmul.f32 %v20, %v30
    %v32 = vmul.f32 %v23, %v30
    %v33 = vsub.f32 %v15, %v31
    %v34 = vsub.f32 %v16, %v32
    %v35 = vmul.f32 %v33, %v33
    %v36 = vmul.f32 %v34, %v34
    %v37 = vsel %vm17, %v35, 0.0
    %38 = vadd.xlane.f32.xlu0 %v37
    %v39 = vpop.xlane.xlu0 %38
    %v40 = vsel %vm17, %v36, 0.0
    %41 = vadd.xlane.f32.xlu0 %v40
    %v42 = vpop.xlane.xlu0 %41
    %v43 = vmul.f32 %v39, %v30
    %v44 = vmul.f32 %v42, %v30
    %v45 = vadd.f32 %v43, 1e-05
    %v46 = vadd.f32 %v44, 1e-05
    %v47 = vrsqrt.pop %v45
    %v48 = vmul.f32 %v47, %v45
    %v49 = vmul.f32 %v48, %v47
    %v50 = vmul.f32 0.5, %v49
    %v51 = vsub.f32 1.5, %v50
    %v52 = vmul.f32 %v47, %v51
    %vm53 = vweird.f32 %v45
    %vm54 = vweird.f32 %v47
    %vm55 = vmor %vm53, %vm54
    %v56 = vsel %vm55, %v47, %v52
    %v57 = vrsqrt.pop %v46
    %v58 = vmul.f32 %v57, %v46
    %v59 = vmul.f32 %v58, %v57
    %v60 = vmul.f32 0.5, %v59
    %v61 = vsub.f32 1.5, %v60
    %v62 = vmul.f32 %v57, %v61
    %vm63 = vweird.f32 %v46
    %vm64 = vweird.f32 %v57
    %vm65 = vmor %vm63, %vm64
    %v66 = vsel %vm65, %v57, %v62
    %v67 = vmul.f32 %v33, %v56
    %v68 = vmul.f32 %v34, %v66
    %v69 = vld [vmem:[%s1] sm:$0xff]
    %v70 = vld [vmem:[%s1 + $0x8] sm:$0xff]
    %v71 = vld [vmem:[%s1 + $0x10] sm:$0xff]
    %v72 = vld [vmem:[%s1 + $0x18] sm:$0xff]
    %v73 = vld [vmem:[%s2] sm:$0x1]
    %v75 = vperm.slane %v73, 0
    %v78 = vsel %vm17, %v67, 0
    %v81 = vsel %vm17, %v68, 0
    %83 = vmatpush.msra.mxu0 0.0
    %84 = vmatpush.msra.mxu0 0.0
    %85 = vmatpush.msra.mxu0 0.0
    %86 = vmatpush.msra.mxu0 0.0
    %87 = vmatpush.msra.mxu0 0.0
    %88 = vmatpush.msra.mxu0 0.0
    %89 = vmatpush.msra.mxu0 0.0
    %90 = vmatpush.msra.mxu0 0.0
    %91 = vmatpush.msra.mxu0 0.0
    %92 = vmatpush.msra.mxu0 0.0
    %93 = vmatpush.msra.mxu0 0.0
    %94 = vmatpush.msra.mxu0 0.0
    %95 = vmatpush.msra.mxu0 %v72
    %96 = vmatpush.msra.mxu0 %v71
    %97 = vmatpush.msra.mxu0 %v70
    %98 = vmatpush.msra.mxu0 %v69
    %99 = vmatmul.f32.gmra.mxu0 %v78
    %v100 = vpop.f32.mrf.mxu0
    %v101 = vadd.f32 %v75, %v100
    %102 = vmatmul.f32.gmra.mxu0 %v81
    %v103 = vpop.f32.mrf.mxu0
    %v104 = vadd.f32 %v75, %v103
    %105 = vdwg.mxu0
    %v106 = vadd.f32 %v15, %v101
    %v107 = vadd.f32 %v16, %v104
    %108 = vst.msk [vmem:[#allocation2] sm:$0xff] %vm17, %v106
    %109 = vst.msk [vmem:[#allocation2 + $0x8] sm:$0xff] %vm17, %v107
    // Predicated region
    $region14: #{_sublayer_connection_impl.1} parent=1 // pred_check
      _
    $region15: #{_sublayer_connection_impl.1} parent=1 // pred_check_branch
      %111 = sbr.rel (0) target = $region17
    $region16: #{_sublayer_connection_impl.1} parent=1 // pred_region
      %113 = vsyncadd [#allocation3], 0
      %s114 = sshll.u32 [#allocation2], 4
      %s115 = int_to_ptr.vmem [resolvable:$true] %s114
      %s116 = sshll.u32 %s3, 4
      %s117 = int_to_ptr.hbm [resolvable:$true] %s116
      %122 = dma.vmem_to_hbm [thread:$0]  %s115, 256, %s117, [#allocation3], 128, 128, 8
    $region17: #{_sublayer_connection_impl.1} parent=1 // pred_fallthru
      _
    // Predicated region
    $region18: #{_sublayer_connection_impl.1} parent=1 // pred_check
      _
    $region19: #{_sublayer_connection_impl.1} parent=1 // pred_check_branch
      %124 = sbr.rel (0) target = $region21
    $region20: #{_sublayer_connection_impl.1} parent=1 // pred_region
      %126 = dma.done [#allocation3], 256
    $region21: #{_sublayer_connection_impl.1} parent=1 // pred_fallthru
      _
    %127 = vsyncpa [#allocation3], 1

// kernel: _sublayer_connection_impl.1
$region0: #{_sublayer_connection_impl.1}
  #allocation0 [shape = 'u32[]', space=smem, size = 0x4, offset = 0x4, fixed_abs, tag = 'smem constant byte address 0x4 - core index']
  #allocation1 [shape = 'u32[72,128]{1,0:T(1,128)}', space=vmem, size = 0x9000, scoped, tag = 'internal scratch']
  %s0 = inlined_call_operand.vmem [shape: f32[16,32], index: 0, kind: input, shape index: {}]
  %s1 = inlined_call_operand.vmem [shape: f32[32,32], index: 1, kind: input, shape index: {}]
  %s2 = inlined_call_operand.vmem [shape: f32[1,32], index: 2, kind: input, shape index: {}]
  %s3 = inlined_call_operand.hbm [shape: f32[16,32], index: 3, kind: output, shape index: {}]
  %s4 = sld [smem:[#allocation0]]
  $region22: #{_sublayer_connection_impl.1} parent=0
    _
  %s6 = ssub.s32 1, %s4
  %s7 = scalar_select 0, %s6, %s4
  $region1: #{_sublayer_connection_impl.1} parent=0
    #allocation2 [shape = 'u8[8192]{0}', space=vmem, size = 0x2000, scoped, tag = 'output window, operand 0, single buffered']
    #allocation3 [shape = 's32[1]{0}', space=sflag, size = 0x4, scoped, tag = 'scoped memory for _sublayer_connection_impl.1']
    %8 = vsyncpa [#allocation3], 0
    // Predicated region
    $region2: #{_sublayer_connection_impl.1} parent=1 // pred_check
      _
    $region3: #{_sublayer_connection_impl.1} parent=1 // pred_check_branch
      %10 = sbr.rel (0) target = $region5
    $region4: #{_sublayer_connection_impl.1} parent=1 // pred_region
      _
    $region5: #{_sublayer_connection_impl.1} parent=1 // pred_fallthru
      _
    // Predicated region
    $region6: #{_sublayer_connection_impl.1} parent=1 // pred_check
      _
    $region7: #{_sublayer_connection_impl.1} parent=1 // pred_check_branch
      %12 = sbr.rel (0) target = $region9
    $region8: #{_sublayer_connection_impl.1} parent=1 // pred_region
      _
    $region9: #{_sublayer_connection_impl.1} parent=1 // pred_fallthru
      _
    // Predicated region
    $region10: #{_sublayer_connection_impl.1} parent=1 // pred_check
      _
    $region11: #{_sublayer_connection_impl.1} parent=1 // pred_check_branch
      %14 = sbr.rel (0) target = $region13
    $region12: #{_sublayer_connection_impl.1} parent=1 // pred_region
      _
    $region13: #{_sublayer_connection_impl.1} parent=1 // pred_fallthru
      _
    %v15 = vld [vmem:[%s0] sm:$0xff]
    %v16 = vld [vmem:[%s0 + $0x8] sm:$0xff]
    %vm17 = vcmask 261120
    %v18 = vsel %vm17, %v15, 0.0
    %19 = vadd.xlane.f32.xlu0 %v18
    %v20 = vpop.xlane.xlu0 %19
    %v21 = vsel %vm17, %v16, 0.0
    %22 = vadd.xlane.f32.xlu0 %v21
    %v23 = vpop.xlane.xlu0 %22
    %v24 = vrcp.pop 32.0
    %v25 = vmul.f32 32.0, %v24
    %v26 = vsub.f32 1.0, %v25
    %v27 = vmul.f32 %v24, %v26
    %v28 = vadd.f32 %v24, %v27
    %vm29 = vweird.f32 %v24
    %v30 = vsel %vm29, %v24, %v28
    %v31 = vmul.f32 %v20, %v30
    %v32 = vmul.f32 %v23, %v30
    %v33 = vsub.f32 %v15, %v31
    %v34 = vsub.f32 %v16, %v32
    %v35 = vmul.f32 %v33, %v33
    %v36 = vmul.f32 %v34, %v34
    %v37 = vsel %vm17, %v35, 0.0
    %38 = vadd.xlane.f32.xlu0 %v37
    %v39 = vpop.xlane.xlu0 %38
    %v40 = vsel %vm17, %v36, 0.0
    %41 = vadd.xlane.f32.xlu0 %v40
    %v42 = vpop.xlane.xlu0 %41
    %v43 = vmul.f32 %v39, %v30
    %v44 = vmul.f32 %v42, %v30
    %v45 = vadd.f32 %v43, 1e-05
    %v46 = vadd.f32 %v44, 1e-05
    %v47 = vrsqrt.pop %v45
    %v48 = vmul.f32 %v47, %v45
    %v49 = vmul.f32 %v48, %v47
    %v50 = vmul.f32 0.5, %v49
    %v51 = vsub.f32 1.5, %v50
    %v52 = vmul.f32 %v47, %v51
    %vm53 = vweird.f32 %v45
    %vm54 = vweird.f32 %v47
    %vm55 = vmor %vm53, %vm54
    %v56 = vsel %vm55, %v47, %v52
    %v57 = vrsqrt.pop %v46
    %v58 = vmul.f32 %v57, %v46
    %v59 = vmul.f32 %v58, %v57
    %v60 = vmul.f32 0.5, %v59
    %v61 = vsub.f32 1.5, %v60
    %v62 = vmul.f32 %v57, %v61
    %vm63 = vweird.f32 %v46
    %vm64 = vweird.f32 %v57
    %vm65 = vmor %vm63, %vm64
    %v66 = vsel %vm65, %v57, %v62
    %v67 = vmul.f32 %v33, %v56
    %v68 = vmul.f32 %v34, %v66
    %v69 = vld [vmem:[%s1] sm:$0xff]
    %v70 = vld [vmem:[%s1 + $0x8] sm:$0xff]
    %v71 = vld [vmem:[%s1 + $0x10] sm:$0xff]
    %v72 = vld [vmem:[%s1 + $0x18] sm:$0xff]
    %v73 = vld [vmem:[%s2] sm:$0x1]
    %v75 = vperm.slane %v73, 0
    %v78 = vsel %vm17, %v67, 0
    %v81 = vsel %vm17, %v68, 0
    %83 = vmatpush.msra.mxu0 0.0
    %84 = vmatpush.msra.mxu0 0.0
    %85 = vmatpush.msra.mxu0 0.0
    %86 = vmatpush.msra.mxu0 0.0
    %87 = vmatpush.msra.mxu0 0.0
    %88 = vmatpush.msra.mxu0 0.0
    %89 = vmatpush.msra.mxu0 0.0
    %90 = vmatpush.msra.mxu0 0.0
    %91 = vmatpush.msra.mxu0 0.0
    %92 = vmatpush.msra.mxu0 0.0
    %93 = vmatpush.msra.mxu0 0.0
    %94 = vmatpush.msra.mxu0 0.0
    %95 = vmatpush.msra.mxu0 %v72
    %96 = vmatpush.msra.mxu0 %v71
    %97 = vmatpush.msra.mxu0 %v70
    %98 = vmatpush.msra.mxu0 %v69
    %99 = vmatmul.f32.gmra.mxu0 %v78
    %v100 = vpop.f32.mrf.mxu0
    %v101 = vadd.f32 %v75, %v100
    %102 = vmatmul.f32.gmra.mxu0 %v81
    %v103 = vpop.f32.mrf.mxu0
    %v104 = vadd.f32 %v75, %v103
    %105 = vdwg.mxu0
    %v106 = vadd.f32 %v15, %v101
    %v107 = vadd.f32 %v16, %v104
    %108 = vst.msk [vmem:[#allocation2] sm:$0xff] %vm17, %v106
    %109 = vst.msk [vmem:[#allocation2 + $0x8] sm:$0xff] %vm17, %v107
    // Predicated region
    $region14: #{_sublayer_connection_impl.1} parent=1 // pred_check
      _
    $region15: #{_sublayer_connection_impl.1} parent=1 // pred_check_branch
      %111 = sbr.rel (0) target = $region17
    $region16: #{_sublayer_connection_impl.1} parent=1 // pred_region
      %113 = vsyncadd [#allocation3], 0
      %s114 = sshll.u32 [#allocation2], 4
      %s115 = int_to_ptr.vmem [resolvable:$true] %s114
      %s116 = sshll.u32 %s3, 4
      %s117 = int_to_ptr.hbm [resolvable:$true] %s116
      %122 = dma.vmem_to_hbm [thread:$0]  %s115, 256, %s117, [#allocation3], 128, 128, 8
    $region17: #{_sublayer_connection_impl.1} parent=1 // pred_fallthru
      _
    // Predicated region
    $region18: #{_sublayer_connection_impl.1} parent=1 // pred_check
      _
    $region19: #{_sublayer_connection_impl.1} parent=1 // pred_check_branch
      %124 = sbr.rel (0) target = $region21
    $region20: #{_sublayer_connection_impl.1} parent=1 // pred_region
      %126 = dma.done [#allocation3], 256
    $region21: #{_sublayer_connection_impl.1} parent=1 // pred_fallthru
      _
    %127 = vsyncpa [#allocation3], 1

</llo_original>
